<compile_context>
chip_gen: v7x
topology: tpu7x:2x2x1
jax: 0.10.0
libtpu: 0.0.40
codegen_flags: <defaults>
</compile_context>

<pallas_src>
import functools

import jax
import jax.numpy as jnp
from jax import lax
from jax.experimental import pallas as pl
from jax.experimental.pallas import tpu as pltpu

_LANE = 128
_SUB = 8                 # sublane height of the per-tile partial-sum block
_CHUNK_ROWS = 256        # inner-loop chunk: (256, 128) f32 = 32 vregs / value
_MAX_BLOCK_ROWS = 2048   # (2048, 128) f32 = 1 MiB per input block


def _round_up(a, b):
    return ((a + b - 1) // b) * b


def _focal_loss_kernel(x_ref, t_ref, o_ref, *, gamma, alpha, eps, rows_total,
                       block_rows, chunk_rows, needs_mask, binary_targets):
    num_chunks = block_rows // chunk_rows
    # Rows of this tile that are in bounds (only < block_rows on the ragged
    # last tile).  Tile-local indices -> no int32 overflow for huge inputs.
    row_limit = rows_total - pl.program_id(0) * block_rows

    def chunk_partial(c):
        start = c * chunk_rows
        if not isinstance(start, int):
            start = pl.multiple_of(start, chunk_rows)
        x = x_ref[pl.ds(start, chunk_rows), :].astype(jnp.float32)
        t = t_ref[pl.ds(start, chunk_rows), :].astype(jnp.float32)

        # input.clamp(eps, 1 - eps)
        x = jnp.clip(x, eps, 1.0 - eps)
        one_m_x = 1.0 - x
        one_m_t = 1.0 - t

        if binary_targets:
            # Exact for t in {0, 1}: pt = x if t == 1 else 1 - x.
            # 1 transcendental per element (EUP relief on v6e/v7x).
            pt = t * x + one_m_t * one_m_x
            logpt = jnp.log(pt)
        else:
            # logpt = -cross_entropy; 3 transcendentals per element.
            logpt = t * jnp.log(x) + one_m_t * jnp.log(one_m_x)
            pt = jnp.exp(logpt)

        # -at == (alpha - 1) + (1 - 2*alpha) * t  (negation folded in)
        neg_at = (alpha - 1.0) + (1.0 - 2.0 * alpha) * t
        base = neg_at * logpt                        # == -at * logpt  >= 0

        one_m_pt = 1.0 - pt
        if gamma == 0.0:
            focal = base
        elif gamma == 1.0:
            focal = base * one_m_pt
        elif gamma == 2.0:
            focal = base * (one_m_pt * one_m_pt)     # no pow for the default
        else:
            focal = base * jnp.power(one_m_pt, gamma)

        if needs_mask:
            # Rows past `rows_total` hold undefined data (possibly NaN/Inf),
            # so this must stay a select, NOT a multiply-by-mask.
            rowi = lax.broadcasted_iota(jnp.int32, focal.shape, 0)
            local_row = c * chunk_rows + rowi
            focal = jnp.where(local_row < row_limit, focal, 0.0)

        # Sublane-grouped reduce: pure vreg adds, no cross-lane work.
        return jnp.sum(focal.reshape(chunk_rows // _SUB, _SUB, _LANE), axis=0)

    if num_chunks == 1:
        acc = chunk_partial(0)
    else:
        acc = lax.fori_loop(
            0, num_chunks,
            lambda c, a: a + chunk_partial(c),
            jnp.zeros((_SUB, _LANE), jnp.float32))

    o_ref[...] = acc[None, :, :]


def _focal_elementwise(x, t, gamma, alpha, eps, binary_targets=False):
    """Plain-jnp per-element focal loss (reference + tiny-tail path)."""
    x = jnp.clip(x.astype(jnp.float32), eps, 1.0 - eps)
    t = t.astype(jnp.float32)
    if binary_targets:
        pt = t * x + (1.0 - t) * (1.0 - x)
        logpt = jnp.log(pt)
    else:
        logpt = t * jnp.log(x) + (1.0 - t) * jnp.log(1.0 - x)
        pt = jnp.exp(logpt)
    at = alpha * t + (1.0 - alpha) * (1.0 - t)
    return -at * logpt * (1.0 - pt) ** gamma


def _reference_focal_loss(inputs, targets, gamma=2.0, alpha=0.25, eps=1e-7):
    return jnp.sum(_focal_elementwise(inputs.reshape(-1), targets.reshape(-1),
                                      float(gamma), float(alpha), float(eps)))


def focal_loss(inputs, targets, gamma=2.0, alpha=0.25, eps=1e-7,
               binary_targets=False):
    """focal_loss(...).sum() as a scalar float32, matching the PyTorch module.

    Set binary_targets=True only when every target is exactly 0 or 1; it cuts
    transcendentals from 3 to 1 per element (big win on v7x's single EUP).
    Inputs/targets may be bf16 (cast to f32 in-register inside the kernel).
    """
    gamma = float(gamma)
    alpha = float(alpha)
    eps = float(eps)

    x = inputs.reshape(-1)
    t = targets.reshape(-1)
    n = x.shape[0]

    rows = n // _LANE
    n_aligned = rows * _LANE

    if rows < _SUB:
        # Tiny input (< 1024 elements): not worth a kernel launch.
        if n == 0:
            return jnp.zeros((), jnp.float32)
        return jnp.sum(
            _focal_elementwise(x, t, gamma, alpha, eps, binary_targets))

    # <=127-element lane tail handled in plain jnp: avoids a wrapper-side pad
    # copy of the whole input (which would double HBM traffic on v5e/v6e).
    tail = None
    if n_aligned < n:
        tail = jnp.sum(
            _focal_elementwise(x[n_aligned:], t[n_aligned:],
                               gamma, alpha, eps, binary_targets))

    x2 = x[:n_aligned].reshape(rows, _LANE)
    t2 = t[:n_aligned].reshape(rows, _LANE)

    # Tile sizing: cap blocks at 1 MiB/input (~85%+ of the elementwise HBM
    # roofline) and aim for >= 2 tiles so both v7x TensorCores get work.
    if rows <= 2 * _MAX_BLOCK_ROWS:
        block_rows = _round_up(-(-rows // 2), _SUB)
        if block_rows > _CHUNK_ROWS:
            block_rows = _round_up(block_rows, _CHUNK_ROWS)
    else:
        block_rows = _MAX_BLOCK_ROWS
    num_tiles = -(-rows // block_rows)
    chunk_rows = min(block_rows, _CHUNK_ROWS)
    needs_mask = (rows % block_rows != 0)

    kernel = functools.partial(
        _focal_loss_kernel,
        gamma=gamma, alpha=alpha, eps=eps, rows_total=int(rows),
        block_rows=int(block_rows), chunk_rows=int(chunk_rows),
        needs_mask=bool(needs_mask), binary_targets=bool(binary_targets))

    n_kernel = rows * _LANE
    cost = pl.CostEstimate(
        flops=15 * n_kernel,
        transcendentals=(1 if binary_targets else 3) * n_kernel,
        bytes_accessed=(n_kernel * (x2.dtype.itemsize + t2.dtype.itemsize)
                        + num_tiles * _SUB * _LANE * 4))

    partials = pl.pallas_call(
        kernel,
        out_shape=jax.ShapeDtypeStruct((num_tiles, _SUB, _LANE), jnp.float32),
        grid=(num_tiles,),
        in_specs=[
            pl.BlockSpec((block_rows, _LANE), lambda i: (i, 0)),
            pl.BlockSpec((block_rows, _LANE), lambda i: (i, 0)),
        ],
        out_specs=pl.BlockSpec((1, _SUB, _LANE), lambda i: (i, 0, 0)),
        compiler_params=pltpu.CompilerParams(
            dimension_semantics=("parallel",)),
        cost_estimate=cost,
    )(x2, t2)

    total = jnp.sum(partials)
    if tail is not None:
        total = total + tail
    return total


if __name__ == "__main__":
    key = jax.random.PRNGKey(0)
    k1, k2, k3, k4, k5, k6 = jax.random.split(key, 6)

    # Primary shape implied by the module: NCHW probabilities + binary targets.
    x = jax.nn.sigmoid(jax.random.normal(k1, (2, 4, 16, 16), dtype=jnp.float32))
    t = (jax.random.uniform(k2, (2, 4, 16, 16)) > 0.5).astype(jnp.float32)
    ref = _reference_focal_loss(x, t)

    loss = focal_loss(x, t)                            # general soft-target path
    jax.block_until_ready(loss)
    assert jnp.allclose(loss, ref, rtol=1e-5, atol=1e-4), (loss, ref)

    loss_bin = focal_loss(x, t, binary_targets=True)   # 1-transcendental path
    jax.block_until_ready(loss_bin)
    assert jnp.allclose(loss_bin, ref, rtol=1e-5, atol=1e-4), (loss_bin, ref)

    # Ragged size (lane tail + partial last row tile) with soft targets.
    xr = jax.nn.sigmoid(jax.random.normal(k3, (1, 3, 100, 100), dtype=jnp.float32))
    tr = jax.random.uniform(k4, (1, 3, 100, 100), dtype=jnp.float32)
    loss_r = focal_loss(xr, tr)
    jax.block_until_ready(loss_r)
    ref_r = _reference_focal_loss(xr, tr)
    assert jnp.allclose(loss_r, ref_r, rtol=1e-4, atol=1e-3), (loss_r, ref_r)

    # Larger size exercising the inner multi-chunk fori_loop path.
    xl = jax.nn.sigmoid(jax.random.normal(k5, (8, 4, 64, 64), dtype=jnp.float32))
    tl = (jax.random.uniform(k6, (8, 4, 64, 64)) > 0.5).astype(jnp.float32)
    loss_l = focal_loss(xl, tl)
    jax.block_until_ready(loss_l)
    ref_l = _reference_focal_loss(xl, tl)
    assert jnp.allclose(loss_l, ref_l, rtol=1e-4, atol=1e-2), (loss_l, ref_l)

    print("KERNEL_OK")
</pallas_src>

<mosaic_0001>
module attributes {stable_mosaic.version = 11 : i64} {
  func.func @_focal_loss_kernel(%arg0: i32, %arg1: memref<8x128xf32, #tpu.memory_space<vmem>>, %arg2: memref<8x128xf32, #tpu.memory_space<vmem>>, %arg3: memref<1x8x128xf32, #tpu.memory_space<vmem>>) attributes {dimension_semantics = [#tpu.dimension_semantics<parallel>], iteration_bounds = array<i64: 2>, scalar_prefetch = 0 : i64, scratch_operands = 0 : i64, tpu.core_type = #tpu.core_type<tc>, window_params = [{transform_indices = @transform_0, window_bounds = array<i64: 8, 128>}, {transform_indices = @transform_1, window_bounds = array<i64: 8, 128>}, {transform_indices = @transform_2, window_bounds = array<i64: 1, 8, 128>}]} {
    %c0 = arith.constant 0 : index
    %c0_0 = arith.constant 0 : index
    %0 = vector.load %arg1[%c0, %c0_0] : memref<8x128xf32, #tpu.memory_space<vmem>>, vector<8x128xf32>
    %c0_1 = arith.constant 0 : index
    %c0_2 = arith.constant 0 : index
    %1 = vector.load %arg2[%c0_1, %c0_2] : memref<8x128xf32, #tpu.memory_space<vmem>>, vector<8x128xf32>
    %cst = arith.constant 1.000000e-07 : f32
    %cst_3 = arith.constant 0.99999988 : f32
    %2 = vector.broadcast %cst : f32 to vector<8x128xf32>
    %3 = arith.maximumf %2, %0 : vector<8x128xf32>
    %4 = vector.broadcast %cst_3 : f32 to vector<8x128xf32>
    %5 = arith.minimumf %4, %3 : vector<8x128xf32>
    %cst_4 = arith.constant 1.000000e+00 : f32
    %6 = vector.broadcast %cst_4 : f32 to vector<8x128xf32>
    %7 = arith.subf %6, %5 : vector<8x128xf32>
    %cst_5 = arith.constant 1.000000e+00 : f32
    %8 = vector.broadcast %cst_5 : f32 to vector<8x128xf32>
    %9 = arith.subf %8, %1 : vector<8x128xf32>
    %10 = math.log %5 : vector<8x128xf32>
    %11 = arith.mulf %1, %10 : vector<8x128xf32>
    %12 = math.log %7 : vector<8x128xf32>
    %13 = arith.mulf %9, %12 : vector<8x128xf32>
    %14 = arith.addf %11, %13 : vector<8x128xf32>
    %15 = math.exp %14 : vector<8x128xf32>
    %cst_6 = arith.constant 5.000000e-01 : f32
    %16 = vector.broadcast %cst_6 : f32 to vector<8x128xf32>
    %17 = arith.mulf %16, %1 : vector<8x128xf32>
    %cst_7 = arith.constant -7.500000e-01 : f32
    %18 = vector.broadcast %cst_7 : f32 to vector<8x128xf32>
    %19 = arith.addf %18, %17 : vector<8x128xf32>
    %20 = arith.mulf %19, %14 : vector<8x128xf32>
    %cst_8 = arith.constant 1.000000e+00 : f32
    %21 = vector.broadcast %cst_8 : f32 to vector<8x128xf32>
    %22 = arith.subf %21, %15 : vector<8x128xf32>
    %23 = arith.mulf %22, %22 : vector<8x128xf32>
    %24 = arith.mulf %20, %23 : vector<8x128xf32>
    %25 = vector.shape_cast %24 : vector<8x128xf32> to vector<1x8x128xf32>
    %cst_9 = arith.constant dense<0.000000e+00> : vector<8x128xf32>
    %26 = vector.multi_reduction <add>, %25, %cst_9 [0] : vector<1x8x128xf32> to vector<8x128xf32>
    %27 = vector.shape_cast %26 : vector<8x128xf32> to vector<1x8x128xf32>
    %c0_10 = arith.constant 0 : index
    %c0_11 = arith.constant 0 : index
    %c0_12 = arith.constant 0 : index
    %28 = vector.load %arg3[%c0_10, %c0_11, %c0_12] : memref<1x8x128xf32, #tpu.memory_space<vmem>>, vector<1x8x128xf32>
    tpu.vector_store %arg3[%c0_10, %c0_11, %c0_12], %27 {strides = array<i32>} : memref<1x8x128xf32, #tpu.memory_space<vmem>>, vector<1x8x128xf32>,
    return
  }
  func.func @transform_0(%arg0: i32) -> (i32, i32) {
    %c0_i32 = arith.constant 0 : i32
    %c0_i32_0 = arith.constant 0 : i32
    return %arg0, %c0_i32 : i32, i32
  }
  func.func @transform_1(%arg0: i32) -> (i32, i32) {
    %c0_i32 = arith.constant 0 : i32
    %c0_i32_0 = arith.constant 0 : i32
    return %arg0, %c0_i32 : i32, i32
  }
  func.func @transform_2(%arg0: i32) -> (i32, i32, i32) {
    %c0_i32 = arith.constant 0 : i32
    %c0_i32_0 = arith.constant 0 : i32
    %c0_i32_1 = arith.constant 0 : i32
    return %arg0, %c0_i32, %c0_i32_0 : i32, i32, i32
  }
}

</mosaic_0001>

<llo_original>
// kernel: tpu_custom_call.1
$region0: #{tpu_custom_call.1}
  #allocation0 [shape = 'u32[]', space=smem, size = 0x4, offset = 0x4, fixed_abs, tag = 'smem constant byte address 0x4 - core index']
  #allocation1 [shape = 'u32[144,128]{1,0:T(1,128)}', space=vmem, size = 0x12000, scoped, tag = 'internal scratch']
  %s0 = inlined_call_operand.hbm [shape: f32[16,128], index: 0, kind: input, shape index: {}]
  %s1 = inlined_call_operand.hbm [shape: f32[16,128], index: 1, kind: input, shape index: {}]
  %s2 = inlined_call_operand.hbm [shape: f32[2,8,128], index: 2, kind: output, shape index: {}]
  %s3 = sld [smem:[#allocation0]]
  $region49: #{tpu_custom_call.1} parent=0
    _
  %s5 = ssub.s32 1, %s3
  %s6 = scalar_select 0, %s5, %s3
  $region1: #{tpu_custom_call.1} parent=0
    #allocation2 [shape = 'u8[8192]{0}', space=vmem, size = 0x2000, scoped, tag = 'input window, operand 0']
    #allocation3 [shape = 's32[2]{0}', space=sflag, size = 0x8, scoped, tag = 'scoped memory for tpu_custom_call.1']
    #allocation4 [shape = 's32[2]{0}', space=sflag, size = 0x8, scoped, tag = 'scoped memory for tpu_custom_call.1']
    #allocation5 [shape = 'u8[8192]{0}', space=vmem, size = 0x2000, scoped, tag = 'input window, operand 1']
    #allocation6 [shape = 's32[2]{0}', space=sflag, size = 0x8, scoped, tag = 'scoped memory for tpu_custom_call.1']
    #allocation7 [shape = 'u8[8192]{0}', space=vmem, size = 0x2000, scoped, tag = 'output window, operand 0']
    %7 = vsyncpa [#allocation3], 0
    %s8 = scalar_lea.sflag [#allocation3], 1
    %9 = vsyncpa %s8, 0
    %10 = vsyncpa [#allocation6], 0
    %s11 = scalar_lea.sflag [#allocation6], 1
    %12 = vsyncpa %s11, 0
    %13 = vsyncpa [#allocation4], 0
    %s14 = scalar_lea.sflag [#allocation4], 1
    %15 = vsyncpa %s14, 0
    loop: start=0, step=1, limit=4
    $region2: #{tpu_custom_call.1} parent=1 // loop_pre_header
      _
    $region3: #{tpu_custom_call.1} parent=1 // loop_header
      %s17 = sphi 0, %s21
      %p18 = scmp.ge.s32.totalorder %s17, 4
      %s27 = sphi 0, %s29
      %s30 = sphi 0, %s27
      %s31 = sphi 0, %s30
      %s47 = sphi 0, %s31
      %s53 = sphi 0, %s55
      %s56 = sphi 0, %s53
      %s57 = sphi 0, %s56
      %s73 = sphi 0, %s57
      %s79 = sphi 0, %s81
      %s82 = sphi 0, %s79
      %s83 = sphi 0, %s82
      %s99 = sphi 0, %s83
    $region4: #{tpu_custom_call.1} parent=1 // loop_header_branch
      %20 = sbr.rel (%p18) target = $region8
    $region5: #{tpu_custom_call.1} parent=1 // loop_body
      %s22 = ssub.s32 %s17, 1
      %s23 = ssub.s32 %s17, 2
      %s24 = sadd.s32 %s17, 1
      %s25 = ssub.s32 %s17, %s24
      %p26 = scmp.eq.s32.totalorder %s25, 0
      %s28 = sadd.s32 %s27, 1
      %s29 = scalar_select %p26, %s27, %s28
      %p32 = pneg %p26
      %p33 = scmp.eq.s32.totalorder %s17, 1
      %p34 = por %p32, %p33
      %p35 = scmp.ne.s32.totalorder %s27, %s30
      %p36 = scmp.eq.s32.totalorder %s17, 0
      %p37 = por %p35, %p36
      %p38 = scmp.ne.s32.totalorder %s27, %s30
      %p39 = scmp.eq.s32.totalorder %s22, 1
      %p40 = por %p38, %p39
      %p41 = scmp.ne.s32.totalorder %s30, %s31
      %p42 = scmp.eq.s32.totalorder %s22, 0
      %p43 = por %p41, %p42
      %p44 = scmp.ne.s32.totalorder %s30, %s31
      %p45 = scmp.eq.s32.totalorder %s23, 1
      %p46 = por %p44, %p45
      %p48 = scmp.ne.s32.totalorder %s31, %s47
      %p49 = scmp.eq.s32.totalorder %s23, 0
      %p50 = por %p48, %p49
      %s51 = ssub.s32 %s17, %s24
      %p52 = scmp.eq.s32.totalorder %s51, 0
      %s54 = sadd.s32 %s53, 1
      %s55 = scalar_select %p52, %s53, %s54
      %p58 = pneg %p52
      %p59 = scmp.eq.s32.totalorder %s17, 1
      %p60 = por %p58, %p59
      %p61 = scmp.ne.s32.totalorder %s53, %s56
      %p62 = scmp.eq.s32.totalorder %s17, 0
      %p63 = por %p61, %p62
      %p64 = scmp.ne.s32.totalorder %s53, %s56
      %p65 = scmp.eq.s32.totalorder %s22, 1
      %p66 = por %p64, %p65
      %p67 = scmp.ne.s32.totalorder %s56, %s57
      %p68 = scmp.eq.s32.totalorder %s22, 0
      %p69 = por %p67, %p68
      %p70 = scmp.ne.s32.totalorder %s56, %s57
      %p71 = scmp.eq.s32.totalorder %s23, 1
      %p72 = por %p70, %p71
      %p74 = scmp.ne.s32.totalorder %s57, %s73
      %p75 = scmp.eq.s32.totalorder %s23, 0
      %p76 = por %p74, %p75
      %s77 = ssub.s32 %s17, %s24
      %p78 = scmp.eq.s32.totalorder %s77, 0
      %s80 = sadd.s32 %s79, 1
      %s81 = scalar_select %p78, %s79, %s80
      %p84 = pneg %p78
      %p85 = scmp.eq.s32.totalorder %s17, 1
      %p86 = por %p84, %p85
      %p87 = scmp.ne.s32.totalorder %s79, %s82
      %p88 = scmp.eq.s32.totalorder %s17, 0
      %p89 = por %p87, %p88
      %p90 = scmp.ne.s32.totalorder %s79, %s82
      %p91 = scmp.eq.s32.totalorder %s22, 1
      %p92 = por %p90, %p91
      %p93 = scmp.ne.s32.totalorder %s82, %s83
      %p94 = scmp.eq.s32.totalorder %s22, 0
      %p95 = por %p93, %p94
      %p96 = scmp.ne.s32.totalorder %s82, %s83
      %p97 = scmp.eq.s32.totalorder %s23, 1
      %p98 = por %p96, %p97
      %p100 = scmp.ne.s32.totalorder %s83, %s99
      %p101 = scmp.eq.s32.totalorder %s23, 0
      %p102 = por %p100, %p101
      %p103 = scmp.le.s32.totalorder 1, %s17
      %p104 = scmp.lt.s32.totalorder %s17, 3
      %p105 = pnand %p103, %p104
      %p106 = pneg %p105
      // Predicated region
      $region9: #{tpu_custom_call.1} parent=5 // pred_check
        _
      $region10: #{tpu_custom_call.1} parent=5 // pred_check_branch
        %108 = sbr.rel (%p105) target = $region12
      $region11: #{tpu_custom_call.1} parent=5 // pred_region
        %s109 = ssub.s32 %s17, 1
      $region12: #{tpu_custom_call.1} parent=5 // pred_fallthru
        _
      %p110 = scmp.lt.s32.totalorder %s17, 2
      // Predicated region
      $region13: #{tpu_custom_call.1} parent=5 // pred_check
        %p111 = pneg %p110
      $region14: #{tpu_custom_call.1} parent=5 // pred_check_branch
        %113 = sbr.rel (%p111) target = $region16
      $region15: #{tpu_custom_call.1} parent=5 // pred_region
        // Predicated region
        $region17: #{tpu_custom_call.1} parent=15 // pred_check
          %p114 = pneg %p37
        $region18: #{tpu_custom_call.1} parent=15 // pred_check_branch
          %116 = sbr.rel (%p114) target = $region20
        $region19: #{tpu_custom_call.1} parent=15 // pred_region
          %s117 = sand.u32 %s27, 1
          %s118 = scalar_lea.sflag [#allocation3], %s117
          %s119 = sand.u32 %s27, 1
          %s120 = smul.addr %s119, 8
          %s121 = scalar_lea.vmem [#allocation2], %s120
          %s123 = ssub.s32 128, 128
          %124 = vsyncadd %s118, %s123
          %s125 = smul.addr %s17, 128
          %s126 = scalar_lea.hbm %s0, %s125
          %s128 = sshll.u32 %s121, 4
          %s129 = int_to_ptr.vmem [resolvable:$true] %s128
          %131 = dma.hbm_to_vmem [thread:$0]  %s126, 128, %s129, %s118
        $region20: #{tpu_custom_call.1} parent=15 // pred_fallthru
          _
        // Predicated region
        $region21: #{tpu_custom_call.1} parent=15 // pred_check
          %p132 = pneg %p63
        $region22: #{tpu_custom_call.1} parent=15 // pred_check_branch
          %134 = sbr.rel (%p132) target = $region24
        $region23: #{tpu_custom_call.1} parent=15 // pred_region
          %s135 = sand.u32 %s53, 1
          %s136 = scalar_lea.sflag [#allocation6], %s135
          %s137 = sand.u32 %s53, 1
          %s138 = smul.addr %s137, 8
          %s139 = scalar_lea.vmem [#allocation5], %s138
          %s141 = ssub.s32 128, 128
          %142 = vsyncadd %s136, %s141
          %s143 = smul.addr %s17, 128
          %s144 = scalar_lea.hbm %s1, %s143
          %s146 = sshll.u32 %s139, 4
          %s147 = int_to_ptr.vmem [resolvable:$true] %s146
          %149 = dma.hbm_to_vmem [thread:$0]  %s144, 128, %s147, %s136
        $region24: #{tpu_custom_call.1} parent=15 // pred_fallthru
          _
      $region16: #{tpu_custom_call.1} parent=5 // pred_fallthru
        _
      %p150 = scmp.le.s32.totalorder 1, %s17
      %p151 = scmp.lt.s32.totalorder %s17, 3
      %p152 = pnand %p150, %p151
      %p153 = pneg %p152
      // Predicated region
      $region25: #{tpu_custom_call.1} parent=5 // pred_check
        _
      $region26: #{tpu_custom_call.1} parent=5 // pred_check_branch
        %155 = sbr.rel (%p152) target = $region28
      $region27: #{tpu_custom_call.1} parent=5 // pred_region
        %s156 = ssub.s32 %s17, 1
        %s157 = sand.u32 %s30, 1
        %s158 = scalar_lea.sflag [#allocation3], %s157
        %s159 = sand.u32 %s30, 1
        %s160 = smul.addr %s159, 8
        %s161 = scalar_lea.vmem [#allocation2], %s160
        // Predicated region
        $region29: #{tpu_custom_call.1} parent=27 // pred_check
          %p162 = pneg %p43
        $region30: #{tpu_custom_call.1} parent=27 // pred_check_branch
          %164 = sbr.rel (%p162) target = $region32
        $region31: #{tpu_custom_call.1} parent=27 // pred_region
          %165 = dma.done %s158, 128
        $region32: #{tpu_custom_call.1} parent=27 // pred_fallthru
          _
        %s166 = sand.u32 %s56, 1
        %s167 = scalar_lea.sflag [#allocation6], %s166
        %s168 = sand.u32 %s56, 1
        %s169 = smul.addr %s168, 8
        %s170 = scalar_lea.vmem [#allocation5], %s169
        // Predicated region
        $region33: #{tpu_custom_call.1} parent=27 // pred_check
          %p171 = pneg %p69
        $region34: #{tpu_custom_call.1} parent=27 // pred_check_branch
          %173 = sbr.rel (%p171) target = $region36
        $region35: #{tpu_custom_call.1} parent=27 // pred_region
          %174 = dma.done %s167, 128
        $region36: #{tpu_custom_call.1} parent=27 // pred_fallthru
          _
        %s175 = sand.u32 %s30, 1
        %s176 = scalar_lea.sflag [#allocation3], %s175
        %s177 = sand.u32 %s30, 1
        %s178 = smul.addr %s177, 8
        %s179 = scalar_lea.vmem [#allocation2], %s178
        %p180 = pneg %p43
        %p181 = pneg %p40
        %s182 = sand.u32 %s56, 1
        %s183 = scalar_lea.sflag [#allocation6], %s182
        %s184 = sand.u32 %s56, 1
        %s185 = smul.addr %s184, 8
        %s186 = scalar_lea.vmem [#allocation5], %s185
        %p187 = pneg %p69
        %p188 = pneg %p66
        %p189 = pneg %p95
        %p190 = pneg %p92
        %s191 = sand.u32 %s82, 1
        %s192 = scalar_lea.sflag [#allocation4], %s191
        %s193 = sand.u32 %s82, 1
        %s194 = smul.addr %s193, 8
        %s195 = scalar_lea.vmem [#allocation7], %s194
        %v196 = vld [vmem:[%s161] sm:$0xff]
        %v197 = vld [vmem:[%s170] sm:$0xff]
        %v198 = vmax.f32 %v196, 1e-07
        %v199 = vmin.f32 %v198, 0.9999999
        %v200 = vsub.f32 1.0, %v199
        %v201 = vsub.f32 1.0, %v197
        %v202 = vlog2.pop %v199
        %v203 = vmul.f32 %v202, 0.6931472
        %v204 = vmul.f32 %v197, %v203
        %v205 = vlog2.pop %v200
        %v206 = vmul.f32 %v205, 0.6931472
        %v207 = vmul.f32 %v201, %v206
        %v208 = vadd.f32 %v204, %v207
        %v209 = vmul.f32 %v208, 1.442695
        %v210 = vpow.pop %v209
        %v211 = vmul.f32 %v197, 0.5
        %v212 = vadd.f32 %v211, -0.75
        %v213 = vmul.f32 %v212, %v208
        %v214 = vsub.f32 1.0, %v210
        %v215 = vmul.f32 %v214, %v214
        %v216 = vmul.f32 %v213, %v215
        %v217 = vadd.f32 %v216, 0.0
        %218 = vst [vmem:[%s195] sm:$0xff] %v217
        %s219 = sand.u32 %s82, 1
        %s220 = scalar_lea.sflag [#allocation4], %s219
        %s221 = sand.u32 %s82, 1
        %s222 = smul.addr %s221, 8
        %s223 = scalar_lea.vmem [#allocation7], %s222
        // Predicated region
        $region37: #{tpu_custom_call.1} parent=27 // pred_check
          %p224 = pneg %p92
        $region38: #{tpu_custom_call.1} parent=27 // pred_check_branch
          %226 = sbr.rel (%p224) target = $region40
        $region39: #{tpu_custom_call.1} parent=27 // pred_region
          %s228 = ssub.s32 128, 128
          %229 = vsyncadd %s220, %s228
          %s230 = smul.addr %s22, 128
          %s231 = scalar_lea.hbm %s2, %s230
          %s233 = sshll.u32 %s223, 4
          %s234 = int_to_ptr.vmem [resolvable:$true] %s233
          %236 = dma.vmem_to_hbm [thread:$0]  %s234, 128, %s231, %s220
        $region40: #{tpu_custom_call.1} parent=27 // pred_fallthru
          _
      $region28: #{tpu_custom_call.1} parent=5 // pred_fallthru
        _
      %p237 = scmp.le.s32.totalorder 2, %s17
      // Predicated region
      $region41: #{tpu_custom_call.1} parent=5 // pred_check
        %p238 = pneg %p237
      $region42: #{tpu_custom_call.1} parent=5 // pred_check_branch
        %240 = sbr.rel (%p238) target = $region44
      $region43: #{tpu_custom_call.1} parent=5 // pred_region
        %s241 = ssub.s32 %s17, 2
        // Predicated region
        $region45: #{tpu_custom_call.1} parent=43 // pred_check
          %p242 = pneg %p98
        $region46: #{tpu_custom_call.1} parent=43 // pred_check_branch
          %244 = sbr.rel (%p242) target = $region48
        $region47: #{tpu_custom_call.1} parent=43 // pred_region
          %s245 = sand.u32 %s83, 1
          %s246 = scalar_lea.sflag [#allocation4], %s245
          %s247 = sand.u32 %s83, 1
          %s248 = smul.addr %s247, 8
          %s249 = scalar_lea.vmem [#allocation7], %s248
          %250 = dma.done %s246, 128
        $region48: #{tpu_custom_call.1} parent=43 // pred_fallthru
          _
      $region44: #{tpu_custom_call.1} parent=5 // pred_fallthru
        _
    $region6: #{tpu_custom_call.1} parent=1 // loop_footer
      %s21 = sadd.s32 1, %s17
    $region7: #{tpu_custom_call.1} parent=1 // loop_footer_branch
      %16 = sbr.rel target = $region3
    $region8: #{tpu_custom_call.1} parent=1 // loop_exit
      _
    %251 = vsyncpa [#allocation3], 1
    %s252 = scalar_lea.sflag [#allocation3], 1
    %253 = vsyncpa %s252, 1
    %254 = vsyncpa [#allocation6], 1
    %s255 = scalar_lea.sflag [#allocation6], 1
    %256 = vsyncpa %s255, 1
    %257 = vsyncpa [#allocation4], 1
    %s258 = scalar_lea.sflag [#allocation4], 1
    %259 = vsyncpa %s258, 1

</llo_original>
